<compile_context>
chip_gen: v5e
topology: v5e:2x2
jax: 0.10.0
libtpu: 0.0.40
codegen_flags: <defaults>
</compile_context>

<pallas_src>
import functools

import jax
import jax.numpy as jnp
from jax import lax
from jax.experimental import pallas as pl
from jax.experimental.pallas import tpu as pltpu

_GUMBEL_EPS = 1e-8       # eps inside gumbel_sample
# module __init__ eps (temperature) == 1, so sigmoid(y/eps) >= 0.5  <=>  y >= 0
_LANES = 128
_MAX_BLOCK_ROWS = 2048   # 2048 * 128 * 4 B = 1 MiB per f32 buffer (safe on v5e/v6e/v7x)


def _round_up(x, m):
    return (x + m - 1) // m * m


def _uniform_from_index(seed_u32, block_rows):
    """Counter-based Uniform[0,1) draw, one per element of the current block.

    murmur3-style 32-bit finalizer keyed on (seed, global element index), so
    different grid blocks never replay the same random bits.
    """
    row = lax.broadcasted_iota(jnp.uint32, (block_rows, _LANES), 0)
    lane = lax.broadcasted_iota(jnp.uint32, (block_rows, _LANES), 1)
    base = (pl.program_id(0) * (block_rows * _LANES)).astype(jnp.uint32)
    idx = base + row * jnp.uint32(_LANES) + lane

    x = idx ^ (seed_u32 * jnp.uint32(0x9E3779B9))
    x = (x ^ (x >> jnp.uint32(16))) * jnp.uint32(0x85EBCA6B)
    x = (x ^ (x >> jnp.uint32(13))) * jnp.uint32(0xC2B2AE35)
    x = x ^ (x >> jnp.uint32(16))
    # Top 24 random bits -> [0, 1).
    return (x >> jnp.uint32(8)).astype(jnp.float32) * jnp.float32(1.0 / (1 << 24))


def _gumbel_train_kernel(seed_ref, x_ref, o_ref, *, block_rows):
    u = _uniform_from_index(seed_ref[0].astype(jnp.uint32), block_rows)
    # g = log(u + eps) - log(1 - u + eps), folded into a single log of the ratio
    # (halves the EUP transcendental traffic).
    g = jnp.log((u + _GUMBEL_EPS) / (1.0 - u + _GUMBEL_EPS))
    y = x_ref[...].astype(jnp.float32) + g
    # ((sigmoid(y) >= 0.5).float() - soft).detach() + soft == (y >= 0).float() in value.
    o_ref[...] = (y >= 0.0).astype(jnp.float32)


def _gumbel_eval_kernel(x_ref, o_ref):
    o_ref[...] = (x_ref[...] >= 0).astype(jnp.float32)


def gumbel_softmax_forward(logits, seed=0, training=True):
    """Pallas TPU implementation of GumbelSoftmax.forward."""
    orig_shape = logits.shape
    flat = logits.reshape(-1)
    n = flat.shape[0]

    rows = pl.cdiv(n, _LANES)
    block_rows = min(_MAX_BLOCK_ROWS, _round_up(rows, 8))
    rows_padded = _round_up(rows, block_rows)
    n_padded = rows_padded * _LANES
    if n_padded != n:
        flat = jnp.pad(flat, (0, n_padded - n))
    x2d = flat.reshape(rows_padded, _LANES)
    grid = (rows_padded // block_rows,)

    if training:
        seed_arr = jnp.asarray([seed], dtype=jnp.int32)
        kernel = functools.partial(_gumbel_train_kernel, block_rows=block_rows)
        out2d = pl.pallas_call(
            kernel,
            out_shape=jax.ShapeDtypeStruct((rows_padded, _LANES), jnp.float32),
            grid_spec=pltpu.PrefetchScalarGridSpec(
                num_scalar_prefetch=1,
                grid=grid,
                in_specs=[pl.BlockSpec((block_rows, _LANES), lambda i, s: (i, 0))],
                out_specs=pl.BlockSpec((block_rows, _LANES), lambda i, s: (i, 0)),
            ),
            compiler_params=pltpu.CompilerParams(
                dimension_semantics=("parallel",)
            ),
        )(seed_arr, x2d)
    else:
        out2d = pl.pallas_call(
            _gumbel_eval_kernel,
            out_shape=jax.ShapeDtypeStruct((rows_padded, _LANES), jnp.float32),
            grid=grid,
            in_specs=[pl.BlockSpec((block_rows, _LANES), lambda i: (i, 0))],
            out_specs=pl.BlockSpec((block_rows, _LANES), lambda i: (i, 0)),
            compiler_params=pltpu.CompilerParams(
                dimension_semantics=("parallel",)
            ),
        )(x2d)

    out_flat = out2d.reshape(-1)
    if n_padded != n:
        out_flat = out_flat[:n]
    return out_flat.reshape(orig_shape)


if __name__ == "__main__":
    key = jax.random.PRNGKey(0)
    # Small NCHW logits tensor consistent with a spatial gating mask.
    logits = jax.random.normal(key, (2, 4, 16, 16), dtype=jnp.float32)

    # Training-mode forward (gumbel noise + hard straight-through gate).
    out_train = jax.block_until_ready(
        gumbel_softmax_forward(logits, seed=0, training=True))

    # Eval-mode forward (hard threshold at 0).
    out_eval = jax.block_until_ready(
        gumbel_softmax_forward(logits, training=False))

    # Sanity checks: shapes preserved, outputs are binary {0, 1}.
    assert out_train.shape == logits.shape
    assert out_eval.shape == logits.shape
    assert bool(jnp.all((out_train == 0.0) | (out_train == 1.0)))
    assert bool(jnp.all((out_eval == 0.0) | (out_eval == 1.0)))
    # Eval path must exactly match the reference threshold.
    ref_eval = (logits >= 0).astype(jnp.float32)
    assert bool(jnp.all(out_eval == ref_eval))

    # TODO(synk): straight-through gradient wiring (.detach() trick) is autograd-only;
    # only the forward value (the hard gate) is computed here.
    print("KERNEL_OK")
</pallas_src>

<mosaic_0001>
module attributes {stable_mosaic.version = 11 : i64} {
  func.func @_gumbel_train_kernel(%arg0: i32, %arg1: memref<1xi32, #tpu.memory_space<smem>>, %arg2: memref<16x128xf32, #tpu.memory_space<vmem>>, %arg3: memref<16x128xf32, #tpu.memory_space<vmem>>) attributes {dimension_semantics = [#tpu.dimension_semantics<parallel>], iteration_bounds = array<i64: 1>, scalar_prefetch = 1 : i64, scratch_operands = 0 : i64, tpu.core_type = #tpu.core_type<tc>, window_params = [{transform_indices = @transform_0, window_bounds = array<i64: 16, 128>}, {transform_indices = @transform_1, window_bounds = array<i64: 16, 128>}]} {
    %c0 = arith.constant 0 : index
    %0 = memref.load %arg1[%c0] : memref<1xi32, #tpu.memory_space<smem>>
    %1 = tpu.iota {dimensions = array<i32: 0>} : vector<16x128xi32>
    %2 = tpu.iota {dimensions = array<i32: 1>} : vector<16x128xi32>
    %c2048_i32 = arith.constant 2048 : i32
    %3 = arith.muli %arg0, %c2048_i32 : i32
    %c128_i32 = arith.constant 128 : i32
    %4 = vector.broadcast %c128_i32 : i32 to vector<16x128xi32>
    %5 = arith.muli %1, %4 : vector<16x128xi32>
    %6 = vector.broadcast %3 : i32 to vector<16x128xi32>
    %7 = arith.addi %6, %5 : vector<16x128xi32>
    %8 = arith.addi %7, %2 : vector<16x128xi32>
    %c-1640531527_i32 = arith.constant -1640531527 : i32
    %9 = arith.muli %0, %c-1640531527_i32 : i32
    %10 = vector.broadcast %9 : i32 to vector<16x128xi32>
    %11 = arith.xori %8, %10 : vector<16x128xi32>
    %c16_i32 = arith.constant 16 : i32
    %12 = vector.broadcast %c16_i32 : i32 to vector<16x128xi32>
    %13 = arith.shrui %11, %12 : vector<16x128xi32>
    %14 = arith.xori %11, %13 : vector<16x128xi32>
    %c-2048144789_i32 = arith.constant -2048144789 : i32
    %15 = vector.broadcast %c-2048144789_i32 : i32 to vector<16x128xi32>
    %16 = arith.muli %14, %15 : vector<16x128xi32>
    %c13_i32 = arith.constant 13 : i32
    %17 = vector.broadcast %c13_i32 : i32 to vector<16x128xi32>
    %18 = arith.shrui %16, %17 : vector<16x128xi32>
    %19 = arith.xori %16, %18 : vector<16x128xi32>
    %c-1028477387_i32 = arith.constant -1028477387 : i32
    %20 = vector.broadcast %c-1028477387_i32 : i32 to vector<16x128xi32>
    %21 = arith.muli %19, %20 : vector<16x128xi32>
    %c16_i32_0 = arith.constant 16 : i32
    %22 = vector.broadcast %c16_i32_0 : i32 to vector<16x128xi32>
    %23 = arith.shrui %21, %22 : vector<16x128xi32>
    %24 = arith.xori %21, %23 : vector<16x128xi32>
    %c8_i32 = arith.constant 8 : i32
    %25 = vector.broadcast %c8_i32 : i32 to vector<16x128xi32>
    %26 = arith.shrui %24, %25 : vector<16x128xi32>
    %27 = arith.uitofp %26 : vector<16x128xi32> to vector<16x128xf32>
    %cst = arith.constant 5.96046448E-8 : f32
    %28 = vector.broadcast %cst : f32 to vector<16x128xf32>
    %29 = arith.mulf %27, %28 : vector<16x128xf32>
    %cst_1 = arith.constant 9.99999993E-9 : f32
    %30 = vector.broadcast %cst_1 : f32 to vector<16x128xf32>
    %31 = arith.addf %29, %30 : vector<16x128xf32>
    %cst_2 = arith.constant 1.000000e+00 : f32
    %32 = vector.broadcast %cst_2 : f32 to vector<16x128xf32>
    %33 = arith.subf %32, %29 : vector<16x128xf32>
    %cst_3 = arith.constant 9.99999993E-9 : f32
    %34 = vector.broadcast %cst_3 : f32 to vector<16x128xf32>
    %35 = arith.addf %33, %34 : vector<16x128xf32>
    %36 = arith.divf %31, %35 : vector<16x128xf32>
    %37 = math.log %36 : vector<16x128xf32>
    %c0_4 = arith.constant 0 : index
    %c0_5 = arith.constant 0 : index
    %38 = vector.load %arg2[%c0_4, %c0_5] : memref<16x128xf32, #tpu.memory_space<vmem>>, vector<16x128xf32>
    %39 = arith.addf %38, %37 : vector<16x128xf32>
    %cst_6 = arith.constant 0.000000e+00 : f32
    %40 = vector.broadcast %cst_6 : f32 to vector<16x128xf32>
    %41 = arith.cmpf oge, %39, %40 : vector<16x128xf32>
    %42 = arith.extui %41 : vector<16x128xi1> to vector<16x128xi32>
    %43 = arith.sitofp %42 : vector<16x128xi32> to vector<16x128xf32>
    %c0_7 = arith.constant 0 : index
    %c0_8 = arith.constant 0 : index
    %44 = vector.load %arg3[%c0_7, %c0_8] : memref<16x128xf32, #tpu.memory_space<vmem>>, vector<16x128xf32>
    tpu.vector_store %arg3[%c0_7, %c0_8], %43 {strides = array<i32>} : memref<16x128xf32, #tpu.memory_space<vmem>>, vector<16x128xf32>,
    return
  }
  func.func @transform_0(%arg0: i32, %arg1: memref<1xi32, #tpu.memory_space<smem>>) -> (i32, i32) {
    %c0_i32 = arith.constant 0 : i32
    %c0_i32_0 = arith.constant 0 : i32
    return %arg0, %c0_i32 : i32, i32
  }
  func.func @transform_1(%arg0: i32, %arg1: memref<1xi32, #tpu.memory_space<smem>>) -> (i32, i32) {
    %c0_i32 = arith.constant 0 : i32
    %c0_i32_0 = arith.constant 0 : i32
    return %arg0, %c0_i32 : i32, i32
  }
}

</mosaic_0001>

<llo_original>
// kernel: tpu_custom_call.1
$region0: #{tpu_custom_call.1}
  #allocation0 [shape = 'u32[]', space=smem, size = 0x4, offset = 0x4, fixed_abs, tag = 'smem constant byte address 0x4 - core index']
  #allocation1 [shape = 'u32[72,128]{1,0:T(1,128)}', space=vmem, size = 0x9000, scoped, tag = 'internal scratch']
  #allocation2 [shape = 's32[1]{0}', space=sflag, size = 0x4, scoped, tag = 'scoped memory for tpu_custom_call.1']
  #allocation3 [shape = 's32[1]{0:T(128)S(6)}', space=smem, size = 0x200, scoped, tag = 'prefetched SMEM operand 0']
  %s0 = inlined_call_operand.<no memory space> [shape: s32[1], index: 0, kind: input, shape index: {}]
  %s1 = inlined_call_operand.hbm [shape: f32[16,128], index: 1, kind: input, shape index: {}]
  %s2 = inlined_call_operand.hbm [shape: f32[16,128], index: 2, kind: output, shape index: {}]
  %s3 = sld [smem:[#allocation0]]
  $region18: #{tpu_custom_call.1} parent=0
    _
  %s5 = ssub.s32 1, %s3
  %s6 = scalar_select 0, %s5, %s3
  %7 = sst [smem:[#allocation3]] %s0
  $region1: #{tpu_custom_call.1} parent=0
    #allocation4 [shape = 'u8[8192]{0}', space=vmem, size = 0x2000, scoped, tag = 'input window, operand 1, single buffered']
    #allocation5 [shape = 's32[1]{0}', space=sflag, size = 0x4, scoped, tag = 'scoped memory for tpu_custom_call.1']
    #allocation6 [shape = 's32[1]{0}', space=sflag, size = 0x4, scoped, tag = 'scoped memory for tpu_custom_call.1']
    #allocation7 [shape = 'u8[8192]{0}', space=vmem, size = 0x2000, scoped, tag = 'output window, operand 0, single buffered']
    %8 = vsyncpa [#allocation5], 0
    %9 = vsyncpa [#allocation6], 0
    // Predicated region
    $region2: #{tpu_custom_call.1} parent=1 // pred_check
      _
    $region3: #{tpu_custom_call.1} parent=1 // pred_check_branch
      %11 = sbr.rel (0) target = $region5
    $region4: #{tpu_custom_call.1} parent=1 // pred_region
      %13 = vsyncadd [#allocation5], 0
      %s14 = sshll.u32 %s1, 4
      %s15 = int_to_ptr.hbm [resolvable:$true] %s14
      %s16 = sshll.u32 [#allocation4], 4
      %s17 = int_to_ptr.vmem [resolvable:$true] %s16
      %22 = dma.hbm_to_vmem [thread:$0]  %s15, 256, %s17, [#allocation5], 128, 128, 8
    $region5: #{tpu_custom_call.1} parent=1 // pred_fallthru
      _
    // Predicated region
    $region6: #{tpu_custom_call.1} parent=1 // pred_check
      _
    $region7: #{tpu_custom_call.1} parent=1 // pred_check_branch
      %24 = sbr.rel (0) target = $region9
    $region8: #{tpu_custom_call.1} parent=1 // pred_region
      %26 = dma.done [#allocation5], 256
    $region9: #{tpu_custom_call.1} parent=1 // pred_fallthru
      _
    %s27 = sld [smem:[#allocation3]]
    %v28 = vlaneseq
    %v29 = vshrl.u32 %v28, 7
    %v30 = vadd.s32 %v29, 8
    %v31 = vlaneseq
    %v32 = vand.u32 %v31, 127
    %s33 = smul.u32 0, 2048
    %v34 = vmul.u32 %v29, 128
    %v35 = vmul.u32 %v30, 128
    %v36 = vstv %s33
    %v37 = vadd.s32 %v36, %v34
    %v38 = vadd.s32 %v36, %v35
    %v39 = vadd.s32 %v37, %v32
    %v40 = vadd.s32 %v38, %v32
    %s41 = smul.u32 %s27, 2654435769
    %v42 = vstv %s41
    %v43 = vxor.u32 %v39, %v42
    %v44 = vxor.u32 %v40, %v42
    %v45 = vshrl.u32 %v43, 16
    %v46 = vshrl.u32 %v44, 16
    %v47 = vxor.u32 %v43, %v45
    %v48 = vxor.u32 %v44, %v46
    %v49 = vmul.u32 %v47, 2246822507
    %v50 = vmul.u32 %v48, 2246822507
    %v51 = vshrl.u32 %v49, 13
    %v52 = vshrl.u32 %v50, 13
    %v53 = vxor.u32 %v49, %v51
    %v54 = vxor.u32 %v50, %v52
    %v55 = vmul.u32 %v53, 3266489909
    %v56 = vmul.u32 %v54, 3266489909
    %v57 = vshrl.u32 %v55, 16
    %v58 = vshrl.u32 %v56, 16
    %v59 = vxor.u32 %v55, %v57
    %v60 = vxor.u32 %v56, %v58
    %v61 = vshrl.u32 %v59, 8
    %v62 = vshrl.u32 %v60, 8
    %v63 = vshrl.u32 %v61, 16
    %v64 = vand.u32 %v61, 65535
    %v65 = vcvt.s32.f32 %v63
    %v66 = vmul.f32 %v65, 65536.0
    %v67 = vcvt.s32.f32 %v64
    %v68 = vadd.f32 %v66, %v67
    %v69 = vshrl.u32 %v62, 16
    %v70 = vand.u32 %v62, 65535
    %v71 = vcvt.s32.f32 %v69
    %v72 = vmul.f32 %v71, 65536.0
    %v73 = vcvt.s32.f32 %v70
    %v74 = vadd.f32 %v72, %v73
    %v75 = vmul.f32 %v68, 5.9604645e-08
    %v76 = vmul.f32 %v74, 5.9604645e-08
    %v77 = vadd.f32 %v75, 1e-08
    %v78 = vadd.f32 %v76, 1e-08
    %v79 = vsub.f32 1.0, %v75
    %v80 = vsub.f32 1.0, %v76
    %v81 = vadd.f32 %v79, 1e-08
    %v82 = vadd.f32 %v80, 1e-08
    %v83 = vrcp.pop %v81
    %v84 = vmul.f32 %v81, %v83
    %v85 = vsub.f32 1.0, %v84
    %v86 = vmul.f32 %v83, %v85
    %v87 = vadd.f32 %v83, %v86
    %vm88 = vweird.f32 %v81
    %vm89 = vweird.f32 %v83
    %vm90 = vmor %vm88, %vm89
    %v91 = vsel %vm90, %v83, %v87
    %v92 = vand.u32 2147483647, %v81
    %vm93 = vcmp.eq.f32.partialorder %v92, 8.507059e+37
    %v94 = vand.u32 %v81, 2147483648
    %v95 = vor.u32 1.1754944e-38, %v94
    %v96 = vsel %vm93, %v95, %v91
    %v97 = vmul.f32 %v77, %v96
    %v98 = vrcp.pop %v82
    %v99 = vmul.f32 %v82, %v98
    %v100 = vsub.f32 1.0, %v99
    %v101 = vmul.f32 %v98, %v100
    %v102 = vadd.f32 %v98, %v101
    %vm103 = vweird.f32 %v82
    %vm104 = vweird.f32 %v98
    %vm105 = vmor %vm103, %vm104
    %v106 = vsel %vm105, %v98, %v102
    %v107 = vand.u32 2147483647, %v82
    %vm108 = vcmp.eq.f32.partialorder %v107, 8.507059e+37
    %v109 = vand.u32 %v82, 2147483648
    %v110 = vor.u32 1.1754944e-38, %v109
    %v111 = vsel %vm108, %v110, %v106
    %v112 = vmul.f32 %v78, %v111
    %v113 = vlog2.pop %v97
    %v114 = vmul.f32 %v113, 0.6931472
    %v115 = vlog2.pop %v112
    %v116 = vmul.f32 %v115, 0.6931472
    %v117 = vld [vmem:[#allocation4] sm:$0xff]
    %v118 = vld [vmem:[#allocation4 + $0x8] sm:$0xff]
    %v119 = vadd.f32 %v117, %v114
    %v120 = vadd.f32 %v118, %v116
    %vm121 = vcmp.ge.f32.partialorder %v119, 0.0
    %vm122 = vcmp.ge.f32.partialorder %v120, 0.0
    %v123 = vsel %vm121, 1, 0
    %v124 = vsel %vm122, 1, 0
    %v125 = vcvt.s32.f32 %v123
    %v126 = vcvt.s32.f32 %v124
    %127 = vst [vmem:[#allocation7] sm:$0xff] %v125
    %128 = vst [vmem:[#allocation7 + $0x8] sm:$0xff] %v126
    // Predicated region
    $region10: #{tpu_custom_call.1} parent=1 // pred_check
      _
    $region11: #{tpu_custom_call.1} parent=1 // pred_check_branch
      %130 = sbr.rel (0) target = $region13
    $region12: #{tpu_custom_call.1} parent=1 // pred_region
      %132 = vsyncadd [#allocation6], 0
      %s133 = sshll.u32 [#allocation7], 4
      %s134 = int_to_ptr.vmem [resolvable:$true] %s133
      %s135 = sshll.u32 %s2, 4
      %s136 = int_to_ptr.hbm [resolvable:$true] %s135
      %141 = dma.vmem_to_hbm [thread:$0]  %s134, 256, %s136, [#allocation6], 128, 128, 8
    $region13: #{tpu_custom_call.1} parent=1 // pred_fallthru
      _
    // Predicated region
    $region14: #{tpu_custom_call.1} parent=1 // pred_check
      _
    $region15: #{tpu_custom_call.1} parent=1 // pred_check_branch
      %143 = sbr.rel (0) target = $region17
    $region16: #{tpu_custom_call.1} parent=1 // pred_region
      %145 = dma.done [#allocation6], 256
    $region17: #{tpu_custom_call.1} parent=1 // pred_fallthru
      _
    %146 = vsyncpa [#allocation5], 1
    %147 = vsyncpa [#allocation6], 1

</llo_original>
